<compile_context>
chip_gen: v6e
topology: v6e:2x2x1
jax: 0.10.0
libtpu: 0.0.40
codegen_flags: <defaults>
</compile_context>

<pallas_src>
import jax
import jax.numpy as jnp
from jax.experimental import pallas as pl
from jax.experimental.pallas import tpu as pltpu

_LANES = 128
_DEFAULT_BLOCK_ROWS = 4096  # 4096 * 128 * 4 B = 2 MiB per f32 buffer


def _round_up(x, m):
    return ((x + m - 1) // m) * m


def _cubic_kernel(params_ref, x_ref, o_ref):
    # params_ref: SMEM (3,) f32 -> a, b, c scalars.
    a = params_ref[0]
    b = params_ref[1]
    c = params_ref[2]
    # Compute in f32 (no-op for f32 input; needed on v5e for sub-32-bit dtypes).
    x = x_ref[...].astype(jnp.float32)
    # Horner form: ((a*x + b)*x + c)*x
    y = ((a * x + b) * x + c) * x
    o_ref[...] = y.astype(o_ref.dtype)


def cubic_activation(x, a, b, c, *, block_rows=_DEFAULT_BLOCK_ROWS):
    """Elementwise a*x^3 + b*x^2 + c*x via a Pallas TPU kernel.

    x: any shape, float dtype. a, b, c: python/np scalars or 0-d arrays.
    """
    orig_shape = x.shape
    orig_dtype = x.dtype
    n_elem = x.size

    # Flatten to a lane-dense (rows, 128) slab in the NATIVE dtype.
    # Pad only to a multiple of 128 (cheap, often zero); Pallas handles the
    # ragged last block of the grid itself, so no block-sized pad/slice round
    # trip through HBM.
    n_pad = (-n_elem) % _LANES
    if n_pad:
        x_flat = jnp.concatenate(
            [jnp.reshape(x, (-1,)), jnp.zeros((n_pad,), dtype=orig_dtype)]
        )
    else:
        x_flat = jnp.reshape(x, (-1,))
    rows = (n_elem + n_pad) // _LANES
    x2d = jnp.reshape(x_flat, (rows, _LANES))

    # Clamp the block to the (8-aligned) array extent; keep it a multiple of 8
    # so the (8, 128) tiling constraint holds.
    block_rows = max(8, min(block_rows, _round_up(rows, 8)))
    grid = (pl.cdiv(rows, block_rows),)

    params = jnp.asarray([a, b, c], dtype=jnp.float32)

    out = pl.pallas_call(
        _cubic_kernel,
        out_shape=jax.ShapeDtypeStruct((rows, _LANES), orig_dtype),
        grid_spec=pltpu.PrefetchScalarGridSpec(
            num_scalar_prefetch=1,  # params -> SMEM, passed first to the kernel
            grid=grid,
            in_specs=[pl.BlockSpec((block_rows, _LANES), lambda i, params: (i, 0))],
            out_specs=pl.BlockSpec((block_rows, _LANES), lambda i, params: (i, 0)),
        ),
        compiler_params=pltpu.CompilerParams(
            dimension_semantics=("parallel",),
        ),
    )(params, x2d)

    if n_pad:
        out = jnp.reshape(out, (-1,))[:n_elem]
    return jnp.reshape(out, orig_shape)


if __name__ == "__main__":
    key = jax.random.PRNGKey(0)
    # NCHW input, consistent with a conv-style module usage.
    x = jax.random.normal(key, (2, 4, 16, 16), dtype=jnp.float32)

    # Deterministic parameter init matching the module's __init__ (all ones).
    a, b, c = 1.0, 1.0, 1.0

    y = cubic_activation(x, a, b, c)
    y = jax.block_until_ready(y)

    # Reference check in plain JAX.
    y_ref = a * x ** 3 + b * x ** 2 + c * x
    assert y.shape == x.shape
    assert y.dtype == x.dtype
    assert jnp.allclose(y, y_ref, atol=1e-5, rtol=1e-5)

    print("KERNEL_OK")
</pallas_src>

<mosaic_0001>
module attributes {stable_mosaic.version = 11 : i64} {
  func.func @_cubic_kernel(%arg0: i32, %arg1: memref<3xf32, #tpu.memory_space<smem>>, %arg2: memref<16x128xf32, #tpu.memory_space<vmem>>, %arg3: memref<16x128xf32, #tpu.memory_space<vmem>>) attributes {dimension_semantics = [#tpu.dimension_semantics<parallel>], iteration_bounds = array<i64: 1>, scalar_prefetch = 1 : i64, scratch_operands = 0 : i64, tpu.core_type = #tpu.core_type<tc>, window_params = [{transform_indices = @transform_0, window_bounds = array<i64: 16, 128>}, {transform_indices = @transform_1, window_bounds = array<i64: 16, 128>}]} {
    %c0 = arith.constant 0 : index
    %0 = memref.load %arg1[%c0] : memref<3xf32, #tpu.memory_space<smem>>
    %c1 = arith.constant 1 : index
    %1 = memref.load %arg1[%c1] : memref<3xf32, #tpu.memory_space<smem>>
    %c2 = arith.constant 2 : index
    %2 = memref.load %arg1[%c2] : memref<3xf32, #tpu.memory_space<smem>>
    %c0_0 = arith.constant 0 : index
    %c0_1 = arith.constant 0 : index
    %3 = vector.load %arg2[%c0_0, %c0_1] : memref<16x128xf32, #tpu.memory_space<vmem>>, vector<16x128xf32>
    %4 = vector.broadcast %0 : f32 to vector<16x128xf32>
    %5 = arith.mulf %4, %3 : vector<16x128xf32>
    %6 = vector.broadcast %1 : f32 to vector<16x128xf32>
    %7 = arith.addf %5, %6 : vector<16x128xf32>
    %8 = arith.mulf %7, %3 : vector<16x128xf32>
    %9 = vector.broadcast %2 : f32 to vector<16x128xf32>
    %10 = arith.addf %8, %9 : vector<16x128xf32>
    %11 = arith.mulf %10, %3 : vector<16x128xf32>
    %c0_2 = arith.constant 0 : index
    %c0_3 = arith.constant 0 : index
    %12 = vector.load %arg3[%c0_2, %c0_3] : memref<16x128xf32, #tpu.memory_space<vmem>>, vector<16x128xf32>
    tpu.vector_store %arg3[%c0_2, %c0_3], %11 {strides = array<i32>} : memref<16x128xf32, #tpu.memory_space<vmem>>, vector<16x128xf32>,
    return
  }
  func.func @transform_0(%arg0: i32, %arg1: memref<3xf32, #tpu.memory_space<smem>>) -> (i32, i32) {
    %c0_i32 = arith.constant 0 : i32
    %c0_i32_0 = arith.constant 0 : i32
    return %arg0, %c0_i32 : i32, i32
  }
  func.func @transform_1(%arg0: i32, %arg1: memref<3xf32, #tpu.memory_space<smem>>) -> (i32, i32) {
    %c0_i32 = arith.constant 0 : i32
    %c0_i32_0 = arith.constant 0 : i32
    return %arg0, %c0_i32 : i32, i32
  }
}

</mosaic_0001>

<llo_original>
// kernel: tpu_custom_call.1
$region0: #{tpu_custom_call.1}
  #allocation0 [shape = 'u32[]', space=smem, size = 0x4, offset = 0x4, fixed_abs, tag = 'smem constant byte address 0x4 - core index']
  #allocation1 [shape = 'u32[144,128]{1,0:T(1,128)}', space=vmem, size = 0x12000, scoped, tag = 'internal scratch']
  #allocation2 [shape = 's32[1]{0}', space=sflag, size = 0x4, scoped, tag = 'scoped memory for tpu_custom_call.1']
  #allocation3 [shape = 'u8[512]{0}', space=smem, size = 0x200, scoped, tag = 'prefetched SMEM operand 0']
  %s0 = inlined_call_operand.hbm [shape: f32[3], index: 0, kind: input, shape index: {}]
  %s1 = inlined_call_operand.hbm [shape: f32[16,128], index: 1, kind: input, shape index: {}]
  %s2 = inlined_call_operand.hbm [shape: f32[16,128], index: 2, kind: output, shape index: {}]
  %s3 = sld [smem:[#allocation0]]
  $region18: #{tpu_custom_call.1} parent=0
    _
  %s5 = ssub.s32 1, %s3
  %s6 = scalar_select 0, %s5, %s3
  %8 = dma.hbm_to_smem %s0, 16, [#allocation3], [#allocation2]
  %9 = dma.done [#allocation2], 16
  %10 = sfence
  $region1: #{tpu_custom_call.1} parent=0
    #allocation4 [shape = 'u8[8192]{0}', space=vmem, size = 0x2000, scoped, tag = 'input window, operand 1, single buffered']
    #allocation5 [shape = 's32[1]{0}', space=sflag, size = 0x4, scoped, tag = 'scoped memory for tpu_custom_call.1']
    #allocation6 [shape = 's32[1]{0}', space=sflag, size = 0x4, scoped, tag = 'scoped memory for tpu_custom_call.1']
    #allocation7 [shape = 'u8[8192]{0}', space=vmem, size = 0x2000, scoped, tag = 'output window, operand 0, single buffered']
    %11 = vsyncpa [#allocation5], 0
    %12 = vsyncpa [#allocation6], 0
    // Predicated region
    $region2: #{tpu_custom_call.1} parent=1 // pred_check
      _
    $region3: #{tpu_custom_call.1} parent=1 // pred_check_branch
      %14 = sbr.rel (0) target = $region5
    $region4: #{tpu_custom_call.1} parent=1 // pred_region
      %s16 = ssub.s32 256, 256
      %17 = vsyncadd [#allocation5], %s16
      %s18 = sshll.u32 [#allocation4], 4
      %s19 = int_to_ptr.vmem [resolvable:$true] %s18
      %24 = dma.hbm_to_vmem [thread:$0]  %s1, 256, %s19, [#allocation5], 128, 128, 8
    $region5: #{tpu_custom_call.1} parent=1 // pred_fallthru
      _
    // Predicated region
    $region6: #{tpu_custom_call.1} parent=1 // pred_check
      _
    $region7: #{tpu_custom_call.1} parent=1 // pred_check_branch
      %26 = sbr.rel (0) target = $region9
    $region8: #{tpu_custom_call.1} parent=1 // pred_region
      %27 = dma.done [#allocation5], 256
    $region9: #{tpu_custom_call.1} parent=1 // pred_fallthru
      _
    %s28 = sld [smem:[#allocation3]]
    %s29 = sld [smem:[#allocation3 + $0x1]]
    %s30 = sld [smem:[#allocation3 + $0x2]]
    %v31 = vld [vmem:[#allocation4] sm:$0xff]
    %v32 = vld [vmem:[#allocation4 + $0x8] sm:$0xff]
    %v33 = vstv %s28
    %v34 = vmul.f32 %v33, %v31
    %v35 = vmul.f32 %v33, %v32
    %v36 = vstv %s29
    %v37 = vadd.f32 %v34, %v36
    %v38 = vadd.f32 %v35, %v36
    %v39 = vmul.f32 %v37, %v31
    %v40 = vmul.f32 %v38, %v32
    %v41 = vstv %s30
    %v42 = vadd.f32 %v39, %v41
    %v43 = vadd.f32 %v40, %v41
    %v44 = vmul.f32 %v42, %v31
    %v45 = vmul.f32 %v43, %v32
    %46 = vst [vmem:[#allocation7] sm:$0xff] %v44
    %47 = vst [vmem:[#allocation7 + $0x8] sm:$0xff] %v45
    // Predicated region
    $region10: #{tpu_custom_call.1} parent=1 // pred_check
      _
    $region11: #{tpu_custom_call.1} parent=1 // pred_check_branch
      %49 = sbr.rel (0) target = $region13
    $region12: #{tpu_custom_call.1} parent=1 // pred_region
      %s51 = ssub.s32 256, 256
      %52 = vsyncadd [#allocation6], %s51
      %s53 = sshll.u32 [#allocation7], 4
      %s54 = int_to_ptr.vmem [resolvable:$true] %s53
      %59 = dma.vmem_to_hbm [thread:$0]  %s54, 256, %s2, [#allocation6], 128, 128, 8
    $region13: #{tpu_custom_call.1} parent=1 // pred_fallthru
      _
    // Predicated region
    $region14: #{tpu_custom_call.1} parent=1 // pred_check
      _
    $region15: #{tpu_custom_call.1} parent=1 // pred_check_branch
      %61 = sbr.rel (0) target = $region17
    $region16: #{tpu_custom_call.1} parent=1 // pred_region
      %62 = dma.done [#allocation6], 256
    $region17: #{tpu_custom_call.1} parent=1 // pred_fallthru
      _
    %63 = vsyncpa [#allocation5], 1
    %64 = vsyncpa [#allocation6], 1

</llo_original>
